<compile_context>
chip_gen: v7x
topology: tpu7x:2x2x1
jax: 0.10.0
libtpu: 0.0.40
codegen_flags: <defaults>
</compile_context>

<pallas_src>
import functools
import math

import numpy as np
import jax
import jax.numpy as jnp
from jax.experimental import pallas as pl
from jax.experimental.pallas import tpu as pltpu


# ----------------------------- Pallas kernels -----------------------------

def _matmul_bias_kernel(a_ref, b_ref, bias_ref, o_ref):
    # (TM,K)bf16 @ (K,N)bf16 on the MXU with f32 accumulation, f32 bias add.
    o_ref[...] = (jnp.dot(a_ref[...], b_ref[...],
                          preferred_element_type=jnp.float32)
                  + bias_ref[...]).astype(o_ref.dtype)


def matmul_bias(a, b, bias, *, tm=512, out_dtype=jnp.float32):
    """M-tiled matmul+bias.  A/B are fed to the MXU as bf16; accum/bias are f32."""
    M, K = a.shape
    _, N = b.shape
    tm = M if M <= tm else tm                 # demo shapes fit one block per call
    grid = (pl.cdiv(M, tm),)
    bias2 = bias.reshape(1, N).astype(jnp.float32)
    out_bytes = jnp.dtype(out_dtype).itemsize
    cost = pl.CostEstimate(
        flops=2 * M * K * N,
        transcendentals=0,
        bytes_accessed=M * K * 2 + K * N * 2 + N * 4 + M * N * out_bytes,
    )
    return pl.pallas_call(
        _matmul_bias_kernel,
        out_shape=jax.ShapeDtypeStruct((M, N), out_dtype),
        grid=grid,
        in_specs=[
            pl.BlockSpec((tm, K), lambda i: (i, 0)),
            pl.BlockSpec((K, N), lambda i: (0, 0)),
            pl.BlockSpec((1, N), lambda i: (0, 0)),
        ],
        out_specs=pl.BlockSpec((tm, N), lambda i: (i, 0)),
        compiler_params=pltpu.CompilerParams(
            dimension_semantics=("parallel",)),
        cost_estimate=cost,
    )(a.astype(jnp.bfloat16), b.astype(jnp.bfloat16), bias2)


def _detect_fused_kernel(a_ref, w_ref, bias_ref, whs_ref, cidx_ref, rowgrid_ref,
                         y_ref, t_ref, *, stride):
    # Fused Detect head on one (TM, na*no) tile:
    #   t = A @ W + b          (MXU, f32 accumulate)     -> raw output t_ref
    #   y = sigmoid(t)         (EUP)
    #   y[..., 0:2] = (y*2 - 0.5 + grid) * stride
    #   y[..., 2:4] = (y*2)**2 * anchor_grid
    # Column/row metadata comes from tiny tables instead of full-size broadcasts.
    t = (jnp.dot(a_ref[...], w_ref[...], preferred_element_type=jnp.float32)
         + bias_ref[...])
    t_ref[...] = t                          # raw per-level output (pre-sigmoid)

    s = jax.nn.sigmoid(t)
    s2 = s * 2.0
    c = cidx_ref[...]                       # (1, na*no) int32: channel index in anchor
    gx = rowgrid_ref[:, 0:1]                # (TM, 1) f32: grid x for this spatial row
    gy = rowgrid_ref[:, 1:2]                # (TM, 1) f32: grid y
    gval = jnp.where(c == 0, gx, gy)
    xy = (s2 - 0.5 + gval) * stride
    wh = s2 * s2 * whs_ref[...]
    y_ref[...] = jnp.where(c < 2, xy, jnp.where(c < 4, wh, s))


def detect_fused(a, w, bias, whs, cidx, rowgrid, *, stride, tm=512):
    """Detect 1x1 conv + eval-mode decode in ONE pallas_call.

    a:       (M, C)   conv1 activations, M = N*ny*nx
    w:       (C, na*no) 1x1-conv weight
    bias:    (na*no,)
    whs:     (1, na*no) anchor wh scale per column (1.0 outside channels 2:4)
    cidx:    (1, na*no) int32, channel index within anchor (0..no-1)
    rowgrid: (M, 2)    f32 (gx, gy) per spatial row
    returns  (decoded y, raw t), both (M, na*no) f32.
    """
    M, C = a.shape
    _, NW = w.shape
    tm = M if M <= tm else tm
    grid = (pl.cdiv(M, tm),)
    kern = functools.partial(_detect_fused_kernel, stride=float(stride))
    cost = pl.CostEstimate(
        flops=2 * M * C * NW + 8 * M * NW,
        transcendentals=M * NW,
        bytes_accessed=M * C * 2 + C * NW * 2 + M * 2 * 4 + 2 * M * NW * 4,
    )
    return pl.pallas_call(
        kern,
        out_shape=(jax.ShapeDtypeStruct((M, NW), jnp.float32),
                   jax.ShapeDtypeStruct((M, NW), jnp.float32)),
        grid=grid,
        in_specs=[
            pl.BlockSpec((tm, C), lambda i: (i, 0)),
            pl.BlockSpec((C, NW), lambda i: (0, 0)),
            pl.BlockSpec((1, NW), lambda i: (0, 0)),
            pl.BlockSpec((1, NW), lambda i: (0, 0)),
            pl.BlockSpec((1, NW), lambda i: (0, 0)),
            pl.BlockSpec((tm, 2), lambda i: (i, 0)),
        ],
        out_specs=(pl.BlockSpec((tm, NW), lambda i: (i, 0)),
                   pl.BlockSpec((tm, NW), lambda i: (i, 0))),
        compiler_params=pltpu.CompilerParams(
            dimension_semantics=("parallel",)),
        cost_estimate=cost,
    )(a.astype(jnp.bfloat16), w.astype(jnp.bfloat16),
      bias.reshape(1, NW).astype(jnp.float32),
      whs.astype(jnp.float32), cidx.astype(jnp.int32),
      rowgrid.astype(jnp.float32))


# ----------------------------- JAX glue ------------------------------------

def conv2d_nhwc(x, w_oihw, b, stride, pad, out_dtype=jnp.bfloat16):
    """Conv2d matching torch.nn.Conv2d semantics; x is NHWC, w is (Cout,Cin,kh,kw)."""
    N, H, W, Cin = x.shape
    Cout, _, kh, kw = w_oihw.shape
    xp = jnp.pad(x, ((0, 0), (pad, pad), (pad, pad), (0, 0)))
    Ho = (H + 2 * pad - kh) // stride + 1
    Wo = (W + 2 * pad - kw) // stride + 1
    cols = []
    for ky in range(kh):
        for kx in range(kw):
            cols.append(xp[:, ky:ky + stride * Ho:stride,
                           kx:kx + stride * Wo:stride, :])
    patches = jnp.stack(cols, axis=3)                     # (N,Ho,Wo,kh*kw,Cin)
    a = patches.reshape(N * Ho * Wo, kh * kw * Cin)
    b_mat = jnp.transpose(w_oihw, (2, 3, 1, 0)).reshape(kh * kw * Cin, Cout)
    out = matmul_bias(a, b_mat, b, out_dtype=out_dtype)   # Pallas MXU kernel
    return out.reshape(N, Ho, Wo, Cout)


def init_params(key, in_ch, c0, c1, na, no, num_cls, stride):
    """Deterministic parameter init; Detect bias adjusted like _initialize_biases."""
    ks = jax.random.split(key, 6)

    def conv_w(k, cout, cin, kh, kw):
        bound = 1.0 / math.sqrt(cin * kh * kw)
        return jax.random.uniform(k, (cout, cin, kh, kw), jnp.float32, -bound, bound)

    def conv_b(k, cout, cin, kh, kw):
        bound = 1.0 / math.sqrt(cin * kh * kw)
        return jax.random.uniform(k, (cout,), jnp.float32, -bound, bound)

    params = {
        "w0": conv_w(ks[0], c0, in_ch, 3, 3), "b0": conv_b(ks[1], c0, in_ch, 3, 3),
        "w1": conv_w(ks[2], c1, c0, 3, 3),    "b1": conv_b(ks[3], c1, c0, 3, 3),
        "wd": conv_w(ks[4], na * no, c1, 1, 1),
    }
    bd = conv_b(ks[5], na * no, c1, 1, 1).reshape(na, no)
    bd = bd.at[:, 4].add(math.log(8.0 / (640.0 / stride) ** 2))
    bd = bd.at[:, 5:].add(math.log(0.6 / (num_cls - 0.99)))
    params["bd"] = bd.reshape(-1)
    return params


def seqmodel_forward(x_nchw, params, *, anchors, na, num_cls, stride):
    """Eval-mode SeqModel.forward (augment=False, profile=False)."""
    no = num_cls + 5
    nw = na * no
    x = jnp.transpose(x_nchw, (0, 2, 3, 1)).astype(jnp.float32)   # NCHW -> NHWC
    # Backbone convs: intermediate activations kept in bf16 (halves HBM traffic
    # between layers; MXU consumes bf16 anyway).
    x = conv2d_nhwc(x, params["w0"], params["b0"], stride=2, pad=1,
                    out_dtype=jnp.bfloat16)
    x = conv2d_nhwc(x, params["w1"], params["b1"], stride=2, pad=1,
                    out_dtype=jnp.bfloat16)

    N, ny, nx, C = x.shape
    wd = params["wd"].reshape(nw, C).T                             # (C, na*no)

    # Tiny static decode tables (numpy, baked as constants; no full-size
    # (N,na,ny,nx,no) grid / anchor_grid broadcast arrays).
    anc = np.asarray(anchors, np.float32).reshape(na, 2)           # pixel anchors (anchor_grid)
    whs = np.ones((na, no), np.float32)
    whs[:, 2:4] = anc
    whs = whs.reshape(1, nw)
    cidx = np.tile(np.arange(no, dtype=np.int32), na).reshape(1, nw)
    gy, gx = np.meshgrid(np.arange(ny, dtype=np.float32),
                         np.arange(nx, dtype=np.float32), indexing="ij")
    rowgrid = np.tile(np.stack([gx, gy], -1).reshape(ny * nx, 2), (N, 1))  # (N*ny*nx, 2)

    # Fused Detect: 1x1 conv + sigmoid + grid/anchor decode, one kernel.
    y_dec, t_raw = detect_fused(x.reshape(N * ny * nx, C), wd, params["bd"],
                                jnp.asarray(whs), jnp.asarray(cidx),
                                jnp.asarray(rowgrid), stride=stride)

    # (bs, na*no, ny, nx).view(bs,na,no,ny,nx).permute(0,1,3,4,2) equivalent:
    raw = t_raw.reshape(N, ny, nx, na, no).transpose(0, 3, 1, 2, 4)   # (N, na, ny, nx, no)
    z = (y_dec.reshape(N, ny, nx, na, no)
              .transpose(0, 3, 1, 2, 4)
              .reshape(N, na * ny * nx, no))
    return z, [raw]                                                   # (cat(z,1), x) with nl=1


# ----------------------------- Demo ----------------------------------------

if __name__ == "__main__":
    # Config (mirrors the tiny yaml described at the top of this file).
    num_cls = 2
    anchors = [[10, 13, 16, 30, 33, 23]]     # 1 detection level, na = 3
    na = len(anchors[0]) // 2
    no = num_cls + 5
    in_ch, c0, c1 = 3, 8, 16                  # backbone channels (width_multiple=1.0)
    # stride computed as in SeqModel.__init__: forward zeros(1,3,128,128) -> 128/(128/4)=4
    stride = 4.0

    key = jax.random.PRNGKey(0)
    kp, kx = jax.random.split(key)
    params = init_params(kp, in_ch, c0, c1, na, no, num_cls, stride)

    x = jax.random.normal(kx, (2, in_ch, 16, 16), dtype=jnp.float32)  # NCHW like PyTorch

    fwd = jax.jit(functools.partial(seqmodel_forward,
                                    anchors=tuple(anchors[0]), na=na,
                                    num_cls=num_cls, stride=stride))
    z, raw_list = fwd(x, params)
    jax.block_until_ready(z)
    jax.block_until_ready(raw_list[0])

    assert z.shape == (2, na * 4 * 4, no), z.shape
    assert raw_list[0].shape == (2, na, 4, 4, no), raw_list[0].shape
    assert bool(jnp.all(jnp.isfinite(z))) and bool(jnp.all(jnp.isfinite(raw_list[0])))
    print("KERNEL_OK")
</pallas_src>

<mosaic_0001>
module attributes {stable_mosaic.version = 11 : i64} {
  func.func @_matmul_bias_kernel(%arg0: i32, %arg1: memref<128x27xbf16, #tpu.memory_space<vmem>>, %arg2: memref<27x8xbf16, #tpu.memory_space<vmem>>, %arg3: memref<1x8xf32, #tpu.memory_space<vmem>>, %arg4: memref<128x8xbf16, #tpu.memory_space<vmem>>) attributes {dimension_semantics = [#tpu.dimension_semantics<parallel>], iteration_bounds = array<i64: 1>, scalar_prefetch = 0 : i64, scratch_operands = 0 : i64, tpu.core_type = #tpu.core_type<tc>, window_params = [{transform_indices = @transform_0, window_bounds = array<i64: 128, 27>}, {pipeline_mode = #tpu.pipeline_mode<synchronous>, transform_indices = @transform_1, window_bounds = array<i64: 27, 8>}, {pipeline_mode = #tpu.pipeline_mode<synchronous>, transform_indices = @transform_2, window_bounds = array<i64: 1, 8>}, {transform_indices = @transform_3, window_bounds = array<i64: 128, 8>}]} {
    %c0 = arith.constant 0 : index
    %c0_0 = arith.constant 0 : index
    %0 = vector.load %arg1[%c0, %c0_0] : memref<128x27xbf16, #tpu.memory_space<vmem>>, vector<128x27xbf16>
    %c0_1 = arith.constant 0 : index
    %c0_2 = arith.constant 0 : index
    %1 = vector.load %arg2[%c0_1, %c0_2] : memref<27x8xbf16, #tpu.memory_space<vmem>>, vector<27x8xbf16>
    %cst = arith.constant dense<0.000000e+00> : vector<128x8xf32>
    %2 = tpu.matmul %0, %1, %cst {dimension_numbers = #tpu.dot_dimension_numbers<[1], [0], [0], [1], [0, 0, 1, 1], [], []>} : vector<128x27xbf16>, vector<27x8xbf16>, vector<128x8xf32> -> vector<128x8xf32>
    %c0_3 = arith.constant 0 : index
    %c0_4 = arith.constant 0 : index
    %3 = vector.load %arg3[%c0_3, %c0_4] : memref<1x8xf32, #tpu.memory_space<vmem>>, vector<1x8xf32>
    %4 = vector.broadcast %3 : vector<1x8xf32> to vector<128x8xf32>
    %5 = arith.addf %2, %4 : vector<128x8xf32>
    %6 = arith.truncf %5 : vector<128x8xf32> to vector<128x8xbf16>
    %c0_5 = arith.constant 0 : index
    %c0_6 = arith.constant 0 : index
    %7 = vector.load %arg4[%c0_5, %c0_6] : memref<128x8xbf16, #tpu.memory_space<vmem>>, vector<128x8xbf16>
    tpu.vector_store %arg4[%c0_5, %c0_6], %6 {strides = array<i32>} : memref<128x8xbf16, #tpu.memory_space<vmem>>, vector<128x8xbf16>,
    return
  }
  func.func @transform_0(%arg0: i32) -> (i32, i32) {
    %c0_i32 = arith.constant 0 : i32
    %c0_i32_0 = arith.constant 0 : i32
    return %arg0, %c0_i32 : i32, i32
  }
  func.func @transform_1(%arg0: i32) -> (i32, i32) {
    %c0_i32 = arith.constant 0 : i32
    %c0_i32_0 = arith.constant 0 : i32
    %c0_i32_1 = arith.constant 0 : i32
    return %c0_i32, %c0_i32_0 : i32, i32
  }
  func.func @transform_2(%arg0: i32) -> (i32, i32) {
    %c0_i32 = arith.constant 0 : i32
    %c0_i32_0 = arith.constant 0 : i32
    %c0_i32_1 = arith.constant 0 : i32
    return %c0_i32, %c0_i32_0 : i32, i32
  }
  func.func @transform_3(%arg0: i32) -> (i32, i32) {
    %c0_i32 = arith.constant 0 : i32
    %c0_i32_0 = arith.constant 0 : i32
    return %arg0, %c0_i32 : i32, i32
  }
}

module attributes {stable_mosaic.version = 11 : i64} {
  func.func @_matmul_bias_kernel(%arg0: i32, %arg1: memref<32x72xbf16, #tpu.memory_space<vmem>>, %arg2: memref<72x16xbf16, #tpu.memory_space<vmem>>, %arg3: memref<1x16xf32, #tpu.memory_space<vmem>>, %arg4: memref<32x16xbf16, #tpu.memory_space<vmem>>) attributes {dimension_semantics = [#tpu.dimension_semantics<parallel>], iteration_bounds = array<i64: 1>, scalar_prefetch = 0 : i64, scratch_operands = 0 : i64, tpu.core_type = #tpu.core_type<tc>, window_params = [{transform_indices = @transform_0, window_bounds = array<i64: 32, 72>}, {pipeline_mode = #tpu.pipeline_mode<synchronous>, transform_indices = @transform_1, window_bounds = array<i64: 72, 16>}, {pipeline_mode = #tpu.pipeline_mode<synchronous>, transform_indices = @transform_2, window_bounds = array<i64: 1, 16>}, {transform_indices = @transform_3, window_bounds = array<i64: 32, 16>}]} {
    %c0 = arith.constant 0 : index
    %c0_0 = arith.constant 0 : index
    %0 = vector.load %arg1[%c0, %c0_0] : memref<32x72xbf16, #tpu.memory_space<vmem>>, vector<32x72xbf16>
    %c0_1 = arith.constant 0 : index
    %c0_2 = arith.constant 0 : index
    %1 = vector.load %arg2[%c0_1, %c0_2] : memref<72x16xbf16, #tpu.memory_space<vmem>>, vector<72x16xbf16>
    %cst = arith.constant dense<0.000000e+00> : vector<32x16xf32>
    %2 = tpu.matmul %0, %1, %cst {dimension_numbers = #tpu.dot_dimension_numbers<[1], [0], [0], [1], [0, 0, 1, 1], [], []>} : vector<32x72xbf16>, vector<72x16xbf16>, vector<32x16xf32> -> vector<32x16xf32>
    %c0_3 = arith.constant 0 : index
    %c0_4 = arith.constant 0 : index
    %3 = vector.load %arg3[%c0_3, %c0_4] : memref<1x16xf32, #tpu.memory_space<vmem>>, vector<1x16xf32>
    %4 = vector.broadcast %3 : vector<1x16xf32> to vector<32x16xf32>
    %5 = arith.addf %2, %4 : vector<32x16xf32>
    %6 = arith.truncf %5 : vector<32x16xf32> to vector<32x16xbf16>
    %c0_5 = arith.constant 0 : index
    %c0_6 = arith.constant 0 : index
    %7 = vector.load %arg4[%c0_5, %c0_6] : memref<32x16xbf16, #tpu.memory_space<vmem>>, vector<32x16xbf16>
    tpu.vector_store %arg4[%c0_5, %c0_6], %6 {strides = array<i32>} : memref<32x16xbf16, #tpu.memory_space<vmem>>, vector<32x16xbf16>,
    return
  }
  func.func @transform_0(%arg0: i32) -> (i32, i32) {
    %c0_i32 = arith.constant 0 : i32
    %c0_i32_0 = arith.constant 0 : i32
    return %arg0, %c0_i32 : i32, i32
  }
  func.func @transform_1(%arg0: i32) -> (i32, i32) {
    %c0_i32 = arith.constant 0 : i32
    %c0_i32_0 = arith.constant 0 : i32
    %c0_i32_1 = arith.constant 0 : i32
    return %c0_i32, %c0_i32_0 : i32, i32
  }
  func.func @transform_2(%arg0: i32) -> (i32, i32) {
    %c0_i32 = arith.constant 0 : i32
    %c0_i32_0 = arith.constant 0 : i32
    %c0_i32_1 = arith.constant 0 : i32
    return %c0_i32, %c0_i32_0 : i32, i32
  }
  func.func @transform_3(%arg0: i32) -> (i32, i32) {
    %c0_i32 = arith.constant 0 : i32
    %c0_i32_0 = arith.constant 0 : i32
    return %arg0, %c0_i32 : i32, i32
  }
}

module attributes {stable_mosaic.version = 11 : i64} {
  func.func @_detect_fused_kernel(%arg0: i32, %arg1: memref<32x16xbf16, #tpu.memory_space<vmem>>, %arg2: memref<16x21xbf16, #tpu.memory_space<vmem>>, %arg3: memref<1x21xf32, #tpu.memory_space<vmem>>, %arg4: memref<1x21xf32, #tpu.memory_space<vmem>>, %arg5: memref<1x21xi32, #tpu.memory_space<vmem>>, %arg6: memref<32x2xf32, #tpu.memory_space<vmem>>, %arg7: memref<32x21xf32, #tpu.memory_space<vmem>>, %arg8: memref<32x21xf32, #tpu.memory_space<vmem>>) attributes {dimension_semantics = [#tpu.dimension_semantics<parallel>], iteration_bounds = array<i64: 1>, scalar_prefetch = 0 : i64, scratch_operands = 0 : i64, tpu.core_type = #tpu.core_type<tc>, window_params = [{transform_indices = @transform_0, window_bounds = array<i64: 32, 16>}, {pipeline_mode = #tpu.pipeline_mode<synchronous>, transform_indices = @transform_1, window_bounds = array<i64: 16, 21>}, {pipeline_mode = #tpu.pipeline_mode<synchronous>, transform_indices = @transform_2, window_bounds = array<i64: 1, 21>}, {pipeline_mode = #tpu.pipeline_mode<synchronous>, transform_indices = @transform_3, window_bounds = array<i64: 1, 21>}, {pipeline_mode = #tpu.pipeline_mode<synchronous>, transform_indices = @transform_4, window_bounds = array<i64: 1, 21>}, {transform_indices = @transform_5, window_bounds = array<i64: 32, 2>}, {transform_indices = @transform_6, window_bounds = array<i64: 32, 21>}, {transform_indices = @transform_7, window_bounds = array<i64: 32, 21>}]} {
    %c0 = arith.constant 0 : index
    %c0_0 = arith.constant 0 : index
    %0 = vector.load %arg1[%c0, %c0_0] : memref<32x16xbf16, #tpu.memory_space<vmem>>, vector<32x16xbf16>
    %c0_1 = arith.constant 0 : index
    %c0_2 = arith.constant 0 : index
    %1 = vector.load %arg2[%c0_1, %c0_2] : memref<16x21xbf16, #tpu.memory_space<vmem>>, vector<16x21xbf16>
    %cst = arith.constant dense<0.000000e+00> : vector<32x21xf32>
    %2 = tpu.matmul %0, %1, %cst {dimension_numbers = #tpu.dot_dimension_numbers<[1], [0], [0], [1], [0, 0, 1, 1], [], []>} : vector<32x16xbf16>, vector<16x21xbf16>, vector<32x21xf32> -> vector<32x21xf32>
    %c0_3 = arith.constant 0 : index
    %c0_4 = arith.constant 0 : index
    %3 = vector.load %arg3[%c0_3, %c0_4] : memref<1x21xf32, #tpu.memory_space<vmem>>, vector<1x21xf32>
    %4 = vector.broadcast %3 : vector<1x21xf32> to vector<32x21xf32>
    %5 = arith.addf %2, %4 : vector<32x21xf32>
    %c0_5 = arith.constant 0 : index
    %c0_6 = arith.constant 0 : index
    %6 = vector.load %arg8[%c0_5, %c0_6] : memref<32x21xf32, #tpu.memory_space<vmem>>, vector<32x21xf32>
    tpu.vector_store %arg8[%c0_5, %c0_6], %5 {strides = array<i32>} : memref<32x21xf32, #tpu.memory_space<vmem>>, vector<32x21xf32>,
    %7 = arith.negf %5 : vector<32x21xf32>
    %8 = math.exp %7 : vector<32x21xf32>
    %cst_7 = arith.constant 1.000000e+00 : f32
    %9 = vector.broadcast %cst_7 : f32 to vector<32x21xf32>
    %10 = arith.addf %9, %8 : vector<32x21xf32>
    %11 = arith.divf %9, %10 : vector<32x21xf32>
    %cst_8 = arith.constant 2.000000e+00 : f32
    %12 = vector.broadcast %cst_8 : f32 to vector<32x21xf32>
    %13 = arith.mulf %11, %12 : vector<32x21xf32>
    %c0_9 = arith.constant 0 : index
    %c0_10 = arith.constant 0 : index
    %14 = vector.load %arg5[%c0_9, %c0_10] : memref<1x21xi32, #tpu.memory_space<vmem>>, vector<1x21xi32>
    %c0_11 = arith.constant 0 : index
    %c0_12 = arith.constant 0 : index
    %15 = vector.load %arg6[%c0_11, %c0_12] : memref<32x2xf32, #tpu.memory_space<vmem>>, vector<32x1xf32>
    %c0_13 = arith.constant 0 : index
    %c1 = arith.constant 1 : index
    %16 = vector.load %arg6[%c0_13, %c1] : memref<32x2xf32, #tpu.memory_space<vmem>>, vector<32x1xf32>
    %c0_i32 = arith.constant 0 : i32
    %17 = vector.broadcast %c0_i32 : i32 to vector<1x21xi32>
    %18 = arith.cmpi eq, %14, %17 : vector<1x21xi32>
    %19 = vector.shape_cast %18 : vector<1x21xi1> to vector<1x21xi1>
    %20 = vector.broadcast %19 : vector<1x21xi1> to vector<32x21xi1>
    %21 = vector.shape_cast %15 : vector<32x1xf32> to vector<32x1xf32>
    %22 = vector.broadcast %21 : vector<32x1xf32> to vector<32x21xf32>
    %23 = vector.shape_cast %16 : vector<32x1xf32> to vector<32x1xf32>
    %24 = vector.broadcast %23 : vector<32x1xf32> to vector<32x21xf32>
    %25 = arith.select %20, %22, %24 : vector<32x21xi1>, vector<32x21xf32>
    %cst_14 = arith.constant 5.000000e-01 : f32
    %26 = vector.broadcast %cst_14 : f32 to vector<32x21xf32>
    %27 = arith.subf %13, %26 : vector<32x21xf32>
    %28 = arith.addf %27, %25 : vector<32x21xf32>
    %cst_15 = arith.constant 4.000000e+00 : f32
    %29 = vector.broadcast %cst_15 : f32 to vector<32x21xf32>
    %30 = arith.mulf %28, %29 : vector<32x21xf32>
    %31 = arith.mulf %13, %13 : vector<32x21xf32>
    %c0_16 = arith.constant 0 : index
    %c0_17 = arith.constant 0 : index
    %32 = vector.load %arg4[%c0_16, %c0_17] : memref<1x21xf32, #tpu.memory_space<vmem>>, vector<1x21xf32>
    %33 = vector.broadcast %32 : vector<1x21xf32> to vector<32x21xf32>
    %34 = arith.mulf %31, %33 : vector<32x21xf32>
    %c2_i32 = arith.constant 2 : i32
    %35 = vector.broadcast %c2_i32 : i32 to vector<1x21xi32>
    %36 = arith.cmpi slt, %14, %35 : vector<1x21xi32>
    %c4_i32 = arith.constant 4 : i32
    %37 = vector.broadcast %c4_i32 : i32 to vector<1x21xi32>
    %38 = arith.cmpi slt, %14, %37 : vector<1x21xi32>
    %39 = vector.shape_cast %38 : vector<1x21xi1> to vector<1x21xi1>
    %40 = vector.broadcast %39 : vector<1x21xi1> to vector<32x21xi1>
    %41 = arith.select %40, %34, %11 : vector<32x21xi1>, vector<32x21xf32>
    %42 = vector.shape_cast %36 : vector<1x21xi1> to vector<1x21xi1>
    %43 = vector.broadcast %42 : vector<1x21xi1> to vector<32x21xi1>
    %44 = arith.select %43, %30, %41 : vector<32x21xi1>, vector<32x21xf32>
    %c0_18 = arith.constant 0 : index
    %c0_19 = arith.constant 0 : index
    %45 = vector.load %arg7[%c0_18, %c0_19] : memref<32x21xf32, #tpu.memory_space<vmem>>, vector<32x21xf32>
    tpu.vector_store %arg7[%c0_18, %c0_19], %44 {strides = array<i32>} : memref<32x21xf32, #tpu.memory_space<vmem>>, vector<32x21xf32>,
    return
  }
  func.func @transform_0(%arg0: i32) -> (i32, i32) {
    %c0_i32 = arith.constant 0 : i32
    %c0_i32_0 = arith.constant 0 : i32
    return %arg0, %c0_i32 : i32, i32
  }
  func.func @transform_1(%arg0: i32) -> (i32, i32) {
    %c0_i32 = arith.constant 0 : i32
    %c0_i32_0 = arith.constant 0 : i32
    %c0_i32_1 = arith.constant 0 : i32
    return %c0_i32, %c0_i32_0 : i32, i32
  }
  func.func @transform_2(%arg0: i32) -> (i32, i32) {
    %c0_i32 = arith.constant 0 : i32
    %c0_i32_0 = arith.constant 0 : i32
    %c0_i32_1 = arith.constant 0 : i32
    return %c0_i32, %c0_i32_0 : i32, i32
  }
  func.func @transform_3(%arg0: i32) -> (i32, i32) {
    %c0_i32 = arith.constant 0 : i32
    %c0_i32_0 = arith.constant 0 : i32
    %c0_i32_1 = arith.constant 0 : i32
    return %c0_i32, %c0_i32_0 : i32, i32
  }
  func.func @transform_4(%arg0: i32) -> (i32, i32) {
    %c0_i32 = arith.constant 0 : i32
    %c0_i32_0 = arith.constant 0 : i32
    %c0_i32_1 = arith.constant 0 : i32
    return %c0_i32, %c0_i32_0 : i32, i32
  }
  func.func @transform_5(%arg0: i32) -> (i32, i32) {
    %c0_i32 = arith.constant 0 : i32
    %c0_i32_0 = arith.constant 0 : i32
    return %arg0, %c0_i32 : i32, i32
  }
  func.func @transform_6(%arg0: i32) -> (i32, i32) {
    %c0_i32 = arith.constant 0 : i32
    %c0_i32_0 = arith.constant 0 : i32
    return %arg0, %c0_i32 : i32, i32
  }
  func.func @transform_7(%arg0: i32) -> (i32, i32) {
    %c0_i32 = arith.constant 0 : i32
    %c0_i32_0 = arith.constant 0 : i32
    return %arg0, %c0_i32 : i32, i32
  }
}

</mosaic_0001>

<llo_original>
// kernel: seqmodel_forward.3
$region0: #{seqmodel_forward.3}
  #allocation0 [shape = 'u32[]', space=smem, size = 0x4, offset = 0x4, fixed_abs, tag = 'smem constant byte address 0x4 - core index']
  #allocation1 [shape = 'u32[144,128]{1,0:T(1,128)}', space=vmem, size = 0x12000, scoped, tag = 'internal scratch']
  %s0 = inlined_call_operand.vmem [shape: bf16[128,27], index: 0, kind: input, shape index: {}]
  %s1 = inlined_call_operand.vmem [shape: bf16[27,8], index: 1, kind: input, shape index: {}]
  %s2 = inlined_call_operand.vmem [shape: f32[1,8], index: 2, kind: input, shape index: {}]
  %s3 = inlined_call_operand.vmem [shape: bf16[128,8], index: 3, kind: output, shape index: {}]
  %s4 = sld [smem:[#allocation0]]
  $region22: #{seqmodel_forward.3} parent=0
    _
  %s6 = ssub.s32 1, %s4
  %s7 = scalar_select 0, %s6, %s4
  // Predicated region
  $region2: #{seqmodel_forward.3} parent=0 // pred_check
    _
  $region3: #{seqmodel_forward.3} parent=0 // pred_check_branch
    %9 = sbr.rel (0) target = $region5
  $region4: #{seqmodel_forward.3} parent=0 // pred_region
    _
  $region5: #{seqmodel_forward.3} parent=0 // pred_fallthru
    _
  // Predicated region
  $region6: #{seqmodel_forward.3} parent=0 // pred_check
    _
  $region7: #{seqmodel_forward.3} parent=0 // pred_check_branch
    %11 = sbr.rel (0) target = $region9
  $region8: #{seqmodel_forward.3} parent=0 // pred_region
    _
  $region9: #{seqmodel_forward.3} parent=0 // pred_fallthru
    _
  // Predicated region
  $region10: #{seqmodel_forward.3} parent=0 // pred_check
    _
  $region11: #{seqmodel_forward.3} parent=0 // pred_check_branch
    %13 = sbr.rel (0) target = $region13
  $region12: #{seqmodel_forward.3} parent=0 // pred_region
    _
  $region13: #{seqmodel_forward.3} parent=0 // pred_fallthru
    _
  %v15 = vld [vmem:[%s0] sm:$0xf]
  %v16 = vld [vmem:[%s0 + $0x4] sm:$0xf]
  %v17 = vld [vmem:[%s0 + $0x8] sm:$0xf]
  %v18 = vld [vmem:[%s0 + $0xc] sm:$0xf]
  %v19 = vld [vmem:[%s0 + $0x10] sm:$0xf]
  %v20 = vld [vmem:[%s0 + $0x14] sm:$0xf]
  %v21 = vld [vmem:[%s0 + $0x18] sm:$0xf]
  %v22 = vld [vmem:[%s0 + $0x1c] sm:$0xf]
  %v23 = vld [vmem:[%s0 + $0x20] sm:$0xf]
  %v24 = vld [vmem:[%s0 + $0x24] sm:$0xf]
  %v25 = vld [vmem:[%s0 + $0x28] sm:$0xf]
  %v26 = vld [vmem:[%s0 + $0x2c] sm:$0xf]
  %v27 = vld [vmem:[%s0 + $0x30] sm:$0xf]
  %v28 = vld [vmem:[%s0 + $0x34] sm:$0xf]
  %v29 = vld [vmem:[%s0 + $0x38] sm:$0xf]
  %v30 = vld [vmem:[%s0 + $0x3c] sm:$0xf]
  %v31 = vld [vmem:[%s1] sm:$0xf]
  %v32 = vld [vmem:[%s1 + $0x4] sm:$0xf]
  %v33 = vld [vmem:[%s1 + $0x8] sm:$0xf]
  %v34 = vld [vmem:[%s1 + $0xc] sm:$0x3]
  %v35 = vld [vmem:[%s2] sm:$0x1]
  %v37 = vlaneseq
  %v38 = vshrl.u32 %v37, 7
  %v39 = vsub.s32 0, %v38
  %v40 = vrot.slane %v35, %v39
  %v58 = vunpack.c.l.b16 %v15
  %v59 = vunpack.c.l.b16 %v16
  %v60 = vunpack.c.l.b16 %v17
  %v61 = vunpack.c.l.b16 %v18
  %v62 = vunpack.c.l.b16 %v19
  %v63 = vunpack.c.l.b16 %v20
  %v64 = vunpack.c.l.b16 %v21
  %v65 = vunpack.c.l.b16 %v22
  %v66 = vunpack.c.l.b16 %v23
  %v67 = vunpack.c.l.b16 %v24
  %v68 = vunpack.c.l.b16 %v25
  %v69 = vunpack.c.l.b16 %v26
  %v70 = vunpack.c.l.b16 %v27
  %v71 = vunpack.c.l.b16 %v28
  %v72 = vunpack.c.l.b16 %v29
  %v73 = vunpack.c.l.b16 %v30
  %v74 = vpack.c.b16 %v59, %v58
  %v75 = vpack.c.b16 %v61, %v60
  %v76 = vpack.c.b16 %v63, %v62
  %v77 = vpack.c.b16 %v65, %v64
  %v78 = vpack.c.b16 %v67, %v66
  %v79 = vpack.c.b16 %v69, %v68
  %v80 = vpack.c.b16 %v71, %v70
  %v81 = vpack.c.b16 %v73, %v72
  %v86 = vunpack.c.l.b16 %v31
  %v87 = vunpack.c.l.b16 %v32
  %v88 = vunpack.c.l.b16 %v33
  %v89 = vunpack.c.l.b16 %v34
  %v90 = vpack.c.b16 %v87, %v86
  %v91 = vpack.c.b16 %v89, %v88
  %vm93 = vcmask 220160
  %v95 = vsel %vm93, %v74, 0
  %v98 = vsel %vm93, %v75, 0
  %v101 = vsel %vm93, %v76, 0
  %v104 = vsel %vm93, %v77, 0
  %v107 = vsel %vm93, %v78, 0
  %v110 = vsel %vm93, %v79, 0
  %v113 = vsel %vm93, %v80, 0
  %v116 = vsel %vm93, %v81, 0
  %vm118 = vcmask 1044480
  %vm119 = vcmask 1045504
  %v120 = vsel %vm118, 4294967295, 65535
  %v121 = vsel %vm119, %v120, 0
  %v123 = vand.u32 %v91, %v121
  %125 = vmatprep.subr.bf16.mxu0 0
  %126 = vmatpush1.bf16.msra.mxu0 %v90
  %127 = vmatprep.subr.bf16.mxu0 0
  %128 = vmatpush1.bf16.msra.mxu0 %v123
  %129 = vmatprep.subr.bf16.mxu0 0
  %130 = vmatpush1.bf16.msra.mxu0 0
  %131 = vmatprep.subr.bf16.mxu0 0
  %132 = vmatpush1.bf16.msra.mxu0 0
  %133 = vmatprep.subr.bf16.mxu0 0
  %134 = vmatpush1.bf16.msra.mxu0 0
  %135 = vmatprep.subr.bf16.mxu0 0
  %136 = vmatpush1.bf16.msra.mxu0 0
  %137 = vmatprep.subr.bf16.mxu0 0
  %138 = vmatpush1.bf16.msra.mxu0 0
  %139 = vmatprep.subr.bf16.mxu0 0
  %140 = vmatpush1.bf16.msra.mxu0 0
  %141 = vmatprep.subr.bf16.mxu0 0
  %142 = vmatpush1.bf16.msra.mxu0 0
  %143 = vmatprep.subr.bf16.mxu0 0
  %144 = vmatpush1.bf16.msra.mxu0 0
  %145 = vmatprep.subr.bf16.mxu0 0
  %146 = vmatpush1.bf16.msra.mxu0 0
  %147 = vmatprep.subr.bf16.mxu0 0
  %148 = vmatpush1.bf16.msra.mxu0 0
  %149 = vmatprep.subr.bf16.mxu0 0
  %150 = vmatpush1.bf16.msra.mxu0 0
  %151 = vmatprep.subr.bf16.mxu0 0
  %152 = vmatpush1.bf16.msra.mxu0 0
  %153 = vmatprep.subr.bf16.mxu0 0
  %154 = vmatpush1.bf16.msra.mxu0 0
  %155 = vmatprep.subr.bf16.mxu0 0
  %156 = vmatpush1.bf16.msra.mxu0 0
  %157 = vmatprep.mubr.bf16.mxu0 0
  %158 = vmatmul.mubr.bf16.gmra.mrb[0].mxu0 %v95
  %v159 = vpop.f32.mrb[0].mxu0
  %v160 = vadd.f32 %v40, %v159
  %v161 = vpop.f32.mrb[0].mxu0
  %v162 = vpop.f32.mrb[0].mxu0
  %v163 = vadd.f32 %v40, %v162
  %v164 = vpop.f32.mrb[0].mxu0
  %165 = vmatprep.mubr.bf16.mxu0 0
  %166 = vmatmul.mubr.bf16.gmra.mrb[0].mxu0 %v98
  %v167 = vpop.f32.mrb[0].mxu0
  %v168 = vadd.f32 %v40, %v167
  %v169 = vpop.f32.mrb[0].mxu0
  %v170 = vpop.f32.mrb[0].mxu0
  %v171 = vadd.f32 %v40, %v170
  %v172 = vpop.f32.mrb[0].mxu0
  %173 = vmatprep.mubr.bf16.mxu0 0
  %174 = vmatmul.mubr.bf16.gmra.mrb[0].mxu0 %v101
  %v175 = vpop.f32.mrb[0].mxu0
  %v176 = vadd.f32 %v40, %v175
  %v177 = vpop.f32.mrb[0].mxu0
  %v178 = vpop.f32.mrb[0].mxu0
  %v179 = vadd.f32 %v40, %v178
  %v180 = vpop.f32.mrb[0].mxu0
  %181 = vmatprep.mubr.bf16.mxu0 0
  %182 = vmatmul.mubr.bf16.gmra.mrb[0].mxu0 %v104
  %v183 = vpop.f32.mrb[0].mxu0
  %v184 = vadd.f32 %v40, %v183
  %v185 = vpop.f32.mrb[0].mxu0
  %v186 = vpop.f32.mrb[0].mxu0
  %v187 = vadd.f32 %v40, %v186
  %v188 = vpop.f32.mrb[0].mxu0
  %189 = vmatprep.mubr.bf16.mxu0 0
  %190 = vmatmul.mubr.bf16.gmra.mrb[0].mxu0 %v107
  %v191 = vpop.f32.mrb[0].mxu0
  %v192 = vadd.f32 %v40, %v191
  %v193 = vpop.f32.mrb[0].mxu0
  %v194 = vpop.f32.mrb[0].mxu0
  %v195 = vadd.f32 %v40, %v194
  %v196 = vpop.f32.mrb[0].mxu0
  %197 = vmatprep.mubr.bf16.mxu0 0
  %198 = vmatmul.mubr.bf16.gmra.mrb[0].mxu0 %v110
  %v199 = vpop.f32.mrb[0].mxu0
  %v200 = vadd.f32 %v40, %v199
  %v201 = vpop.f32.mrb[0].mxu0
  %v202 = vpop.f32.mrb[0].mxu0
  %v203 = vadd.f32 %v40, %v202
  %v204 = vpop.f32.mrb[0].mxu0
  %205 = vmatprep.mubr.bf16.mxu0 0
  %206 = vmatmul.mubr.bf16.gmra.mrb[0].mxu0 %v113
  %v207 = vpop.f32.mrb[0].mxu0
  %v208 = vadd.f32 %v40, %v207
  %v209 = vpop.f32.mrb[0].mxu0
  %v210 = vpop.f32.mrb[0].mxu0
  %v211 = vadd.f32 %v40, %v210
  %v212 = vpop.f32.mrb[0].mxu0
  %213 = vmatprep.mubr.bf16.mxu0 0
  %214 = vmatmul.mubr.bf16.gmra.mrb[0].mxu0 %v116
  %v215 = vpop.f32.mrb[0].mxu0
  %v216 = vadd.f32 %v40, %v215
  %v217 = vpop.f32.mrb[0].mxu0
  %v218 = vpop.f32.mrb[0].mxu0
  %v219 = vadd.f32 %v40, %v218
  %v220 = vpop.f32.mrb[0].mxu0
  %221 = vdwg.mxu0
  %v222 = vpack.c.bf16 %v163, %v160
  %v223 = vpack.c.bf16 %v171, %v168
  %v224 = vpack.c.bf16 %v179, %v176
  %v225 = vpack.c.bf16 %v187, %v184
  %v226 = vpack.c.bf16 %v195, %v192
  %v227 = vpack.c.bf16 %v203, %v200
  %v228 = vpack.c.bf16 %v211, %v208
  %v229 = vpack.c.bf16 %v219, %v216
  %v238 = vunpack.c.l.b16 %v222
  %v239 = vunpack.c.h.b16 %v222
  %v240 = vunpack.c.l.b16 %v223
  %v241 = vunpack.c.h.b16 %v223
  %v242 = vunpack.c.l.b16 %v224
  %v243 = vunpack.c.h.b16 %v224
  %v244 = vunpack.c.l.b16 %v225
  %v245 = vunpack.c.h.b16 %v225
  %v246 = vunpack.c.l.b16 %v226
  %v247 = vunpack.c.h.b16 %v226
  %v248 = vunpack.c.l.b16 %v227
  %v249 = vunpack.c.h.b16 %v227
  %v250 = vunpack.c.l.b16 %v228
  %v251 = vunpack.c.h.b16 %v228
  %v252 = vunpack.c.l.b16 %v229
  %v253 = vunpack.c.h.b16 %v229
  %v254 = vpack.c.b16 %v238, %v238
  %v255 = vpack.c.b16 %v239, %v239
  %v256 = vpack.c.b16 %v240, %v240
  %v257 = vpack.c.b16 %v241, %v241
  %v258 = vpack.c.b16 %v242, %v242
  %v259 = vpack.c.b16 %v243, %v243
  %v260 = vpack.c.b16 %v244, %v244
  %v261 = vpack.c.b16 %v245, %v245
  %v262 = vpack.c.b16 %v246, %v246
  %v263 = vpack.c.b16 %v247, %v247
  %v264 = vpack.c.b16 %v248, %v248
  %v265 = vpack.c.b16 %v249, %v249
  %v266 = vpack.c.b16 %v250, %v250
  %v267 = vpack.c.b16 %v251, %v251
  %v268 = vpack.c.b16 %v252, %v252
  %v269 = vpack.c.b16 %v253, %v253
  %vm286 = vcmask 60416
  %287 = vst.msk [vmem:[%s3] sm:$0xf] %vm286, %v254
  %288 = vst.msk [vmem:[%s3 + $0x4] sm:$0xf] %vm286, %v255
  %289 = vst.msk [vmem:[%s3 + $0x8] sm:$0xf] %vm286, %v256
  %290 = vst.msk [vmem:[%s3 + $0xc] sm:$0xf] %vm286, %v257
  %291 = vst.msk [vmem:[%s3 + $0x10] sm:$0xf] %vm286, %v258
  %292 = vst.msk [vmem:[%s3 + $0x14] sm:$0xf] %vm286, %v259
  %293 = vst.msk [vmem:[%s3 + $0x18] sm:$0xf] %vm286, %v260
  %294 = vst.msk [vmem:[%s3 + $0x1c] sm:$0xf] %vm286, %v261
  %295 = vst.msk [vmem:[%s3 + $0x20] sm:$0xf] %vm286, %v262
  %296 = vst.msk [vmem:[%s3 + $0x24] sm:$0xf] %vm286, %v263
  %297 = vst.msk [vmem:[%s3 + $0x28] sm:$0xf] %vm286, %v264
  %298 = vst.msk [vmem:[%s3 + $0x2c] sm:$0xf] %vm286, %v265
  %299 = vst.msk [vmem:[%s3 + $0x30] sm:$0xf] %vm286, %v266
  %300 = vst.msk [vmem:[%s3 + $0x34] sm:$0xf] %vm286, %v267
  %301 = vst.msk [vmem:[%s3 + $0x38] sm:$0xf] %vm286, %v268
  %302 = vst.msk [vmem:[%s3 + $0x3c] sm:$0xf] %vm286, %v269
  // Predicated region
  $region14: #{seqmodel_forward.3} parent=0 // pred_check
    _
  $region15: #{seqmodel_forward.3} parent=0 // pred_check_branch
    %304 = sbr.rel (0) target = $region17
  $region16: #{seqmodel_forward.3} parent=0 // pred_region
    _
  $region17: #{seqmodel_forward.3} parent=0 // pred_fallthru
    _
  // Predicated region
  $region18: #{seqmodel_forward.3} parent=0 // pred_check
    _
  $region19: #{seqmodel_forward.3} parent=0 // pred_check_branch
    %306 = sbr.rel (0) target = $region21
  $region20: #{seqmodel_forward.3} parent=0 // pred_region
    _
  $region21: #{seqmodel_forward.3} parent=0 // pred_fallthru
    _

// kernel: seqmodel_forward.4
$region0: #{seqmodel_forward.4}
  #allocation0 [shape = 'u32[]', space=smem, size = 0x4, offset = 0x4, fixed_abs, tag = 'smem constant byte address 0x4 - core index']
  #allocation1 [shape = 'u32[144,128]{1,0:T(1,128)}', space=vmem, size = 0x12000, scoped, tag = 'internal scratch']
  %s0 = inlined_call_operand.vmem [shape: bf16[32,72], index: 0, kind: input, shape index: {}]
  %s1 = inlined_call_operand.vmem [shape: bf16[72,16], index: 1, kind: input, shape index: {}]
  %s2 = inlined_call_operand.vmem [shape: f32[1,16], index: 2, kind: input, shape index: {}]
  %s3 = inlined_call_operand.vmem [shape: bf16[32,16], index: 3, kind: output, shape index: {}]
  %s4 = sld [smem:[#allocation0]]
  $region22: #{seqmodel_forward.4} parent=0
    _
  %s6 = ssub.s32 1, %s4
  %s7 = scalar_select 0, %s6, %s4
  // Predicated region
  $region2: #{seqmodel_forward.4} parent=0 // pred_check
    _
  $region3: #{seqmodel_forward.4} parent=0 // pred_check_branch
    %9 = sbr.rel (0) target = $region5
  $region4: #{seqmodel_forward.4} parent=0 // pred_region
    _
  $region5: #{seqmodel_forward.4} parent=0 // pred_fallthru
    _
  // Predicated region
  $region6: #{seqmodel_forward.4} parent=0 // pred_check
    _
  $region7: #{seqmodel_forward.4} parent=0 // pred_check_branch
    %11 = sbr.rel (0) target = $region9
  $region8: #{seqmodel_forward.4} parent=0 // pred_region
    _
  $region9: #{seqmodel_forward.4} parent=0 // pred_fallthru
    _
  // Predicated region
  $region10: #{seqmodel_forward.4} parent=0 // pred_check
    _
  $region11: #{seqmodel_forward.4} parent=0 // pred_check_branch
    %13 = sbr.rel (0) target = $region13
  $region12: #{seqmodel_forward.4} parent=0 // pred_region
    _
  $region13: #{seqmodel_forward.4} parent=0 // pred_fallthru
    _
  %v15 = vld [vmem:[%s0] sm:$0xf]
  %v16 = vld [vmem:[%s0 + $0x4] sm:$0xf]
  %v17 = vld [vmem:[%s0 + $0x8] sm:$0xf]
  %v18 = vld [vmem:[%s0 + $0xc] sm:$0xf]
  %v19 = vld [vmem:[%s1] sm:$0xf]
  %v20 = vld [vmem:[%s1 + $0x4] sm:$0xf]
  %v21 = vld [vmem:[%s1 + $0x8] sm:$0xf]
  %v22 = vld [vmem:[%s1 + $0xc] sm:$0xf]
  %v23 = vld [vmem:[%s1 + $0x10] sm:$0xf]
  %v24 = vld [vmem:[%s1 + $0x14] sm:$0xf]
  %v25 = vld [vmem:[%s1 + $0x18] sm:$0xf]
  %v26 = vld [vmem:[%s1 + $0x1c] sm:$0xf]
  %v27 = vld [vmem:[%s1 + $0x20] sm:$0xf]
  %v28 = vld [vmem:[%s2] sm:$0x1]
  %v30 = vlaneseq
  %v31 = vshrl.u32 %v30, 7
  %v32 = vsub.s32 0, %v31
  %v33 = vrot.slane %v28, %v32
  %v39 = vunpack.c.l.b16 %v15
  %v40 = vunpack.c.l.b16 %v16
  %v41 = vunpack.c.l.b16 %v17
  %v42 = vunpack.c.l.b16 %v18
  %v43 = vpack.c.b16 %v40, %v39
  %v44 = vpack.c.b16 %v42, %v41
  %v54 = vunpack.c.l.b16 %v19
  %v55 = vunpack.c.l.b16 %v20
  %v56 = vunpack.c.l.b16 %v21
  %v57 = vunpack.c.l.b16 %v22
  %v58 = vunpack.c.l.b16 %v23
  %v59 = vunpack.c.l.b16 %v24
  %v60 = vunpack.c.l.b16 %v25
  %v61 = vunpack.c.l.b16 %v26
  %v62 = vunpack.c.l.b16 %v27
  %v63 = vpack.c.b16 %v55, %v54
  %v64 = vpack.c.b16 %v57, %v56
  %v65 = vpack.c.b16 %v59, %v58
  %v66 = vpack.c.b16 %v61, %v60
  %v67 = vpack.c.b16 %v62, %v62
  %vm72 = vcmask 588800
  %v74 = vsel %vm72, %v43, 0
  %v77 = vsel %vm72, %v44, 0
  %vm79 = vcmask 1043456
  %v81 = vsel %vm79, %v67, 0
  %83 = vmatprep.subr.bf16.mxu0 0
  %84 = vmatpush1.bf16.msra.mxu0 %v63
  %85 = vmatprep.subr.bf16.mxu0 0
  %86 = vmatpush1.bf16.msra.mxu0 %v64
  %87 = vmatprep.subr.bf16.mxu0 0
  %88 = vmatpush1.bf16.msra.mxu0 %v65
  %89 = vmatprep.subr.bf16.mxu0 0
  %90 = vmatpush1.bf16.msra.mxu0 %v66
  %91 = vmatprep.subr.bf16.mxu0 0
  %92 = vmatpush1.bf16.msra.mxu0 %v81
  %93 = vmatprep.subr.bf16.mxu0 0
  %94 = vmatpush1.bf16.msra.mxu0 0
  %95 = vmatprep.subr.bf16.mxu0 0
  %96 = vmatpush1.bf16.msra.mxu0 0
  %97 = vmatprep.subr.bf16.mxu0 0
  %98 = vmatpush1.bf16.msra.mxu0 0
  %99 = vmatprep.subr.bf16.mxu0 0
  %100 = vmatpush1.bf16.msra.mxu0 0
  %101 = vmatprep.subr.bf16.mxu0 0
  %102 = vmatpush1.bf16.msra.mxu0 0
  %103 = vmatprep.subr.bf16.mxu0 0
  %104 = vmatpush1.bf16.msra.mxu0 0
  %105 = vmatprep.subr.bf16.mxu0 0
  %106 = vmatpush1.bf16.msra.mxu0 0
  %107 = vmatprep.subr.bf16.mxu0 0
  %108 = vmatpush1.bf16.msra.mxu0 0
  %109 = vmatprep.subr.bf16.mxu0 0
  %110 = vmatpush1.bf16.msra.mxu0 0
  %111 = vmatprep.subr.bf16.mxu0 0
  %112 = vmatpush1.bf16.msra.mxu0 0
  %113 = vmatprep.subr.bf16.mxu0 0
  %114 = vmatpush1.bf16.msra.mxu0 0
  %115 = vmatprep.mubr.bf16.mxu0 0
  %116 = vmatmul.mubr.bf16.gmra.mrb[0].mxu0 %v74
  %v117 = vpop.f32.mrb[0].mxu0
  %v118 = vadd.f32 %v33, %v117
  %v119 = vpop.f32.mrb[0].mxu0
  %v120 = vpop.f32.mrb[0].mxu0
  %v121 = vadd.f32 %v33, %v120
  %v122 = vpop.f32.mrb[0].mxu0
  %123 = vmatprep.mubr.bf16.mxu0 0
  %124 = vmatmul.mubr.bf16.gmra.mrb[0].mxu0 %v77
  %v125 = vpop.f32.mrb[0].mxu0
  %v126 = vadd.f32 %v33, %v125
  %v127 = vpop.f32.mrb[0].mxu0
  %v128 = vpop.f32.mrb[0].mxu0
  %v129 = vadd.f32 %v33, %v128
  %v130 = vpop.f32.mrb[0].mxu0
  %131 = vdwg.mxu0
  %v132 = vpack.c.bf16 %v121, %v118
  %v133 = vpack.c.bf16 %v129, %v126
  %v136 = vunpack.c.l.b16 %v132
  %v137 = vunpack.c.h.b16 %v132
  %v138 = vunpack.c.l.b16 %v133
  %v139 = vunpack.c.h.b16 %v133
  %v140 = vpack.c.b16 %v136, %v136
  %v141 = vpack.c.b16 %v137, %v137
  %v142 = vpack.c.b16 %v138, %v138
  %v143 = vpack.c.b16 %v139, %v139
  %vm148 = vcmask 125952
  %149 = vst.msk [vmem:[%s3] sm:$0xf] %vm148, %v140
  %150 = vst.msk [vmem:[%s3 + $0x4] sm:$0xf] %vm148, %v141
  %151 = vst.msk [vmem:[%s3 + $0x8] sm:$0xf] %vm148, %v142
  %152 = vst.msk [vmem:[%s3 + $0xc] sm:$0xf] %vm148, %v143
  // Predicated region
  $region14: #{seqmodel_forward.4} parent=0 // pred_check
    _
  $region15: #{seqmodel_forward.4} parent=0 // pred_check_branch
    %154 = sbr.rel (0) target = $region17
  $region16: #{seqmodel_forward.4} parent=0 // pred_region
    _
  $region17: #{seqmodel_forward.4} parent=0 // pred_fallthru
    _
  // Predicated region
  $region18: #{seqmodel_forward.4} parent=0 // pred_check
    _
  $region19: #{seqmodel_forward.4} parent=0 // pred_check_branch
    %156 = sbr.rel (0) target = $region21
  $region20: #{seqmodel_forward.4} parent=0 // pred_region
    _
  $region21: #{seqmodel_forward.4} parent=0 // pred_fallthru
    _

// kernel: seqmodel_forward.5
$region0: #{seqmodel_forward.5}
  #allocation0 [shape = 'u32[]', space=smem, size = 0x4, offset = 0x4, fixed_abs, tag = 'smem constant byte address 0x4 - core index']
  #allocation1 [shape = 'u32[144,128]{1,0:T(1,128)}', space=vmem, size = 0x12000, scoped, tag = 'internal scratch']
  %s0 = inlined_call_operand.vmem [shape: bf16[32,16], index: 0, kind: input, shape index: {}]
  %s1 = inlined_call_operand.vmem [shape: bf16[16,21], index: 1, kind: input, shape index: {}]
  %s2 = inlined_call_operand.vmem [shape: f32[1,21], index: 2, kind: input, shape index: {}]
  %s3 = inlined_call_operand.vmem [shape: f32[1,21], index: 3, kind: input, shape index: {}]
  %s4 = inlined_call_operand.vmem [shape: s32[1,21], index: 4, kind: input, shape index: {}]
  %s5 = inlined_call_operand.vmem [shape: f32[32,2], index: 5, kind: input, shape index: {}]
  %s6 = inlined_call_operand.vmem [shape: f32[32,21], index: 6, kind: output, shape index: {0}]
  %s7 = inlined_call_operand.vmem [shape: f32[32,21], index: 7, kind: output, shape index: {1}]
  %8 = xla_tuple %s6, %s7
  %s9 = sld [smem:[#allocation0]]
  $region42: #{seqmodel_forward.5} parent=0
    _
  %s11 = ssub.s32 1, %s9
  %s12 = scalar_select 0, %s11, %s9
  // Predicated region
  $region2: #{seqmodel_forward.5} parent=0 // pred_check
    _
  $region3: #{seqmodel_forward.5} parent=0 // pred_check_branch
    %14 = sbr.rel (0) target = $region5
  $region4: #{seqmodel_forward.5} parent=0 // pred_region
    _
  $region5: #{seqmodel_forward.5} parent=0 // pred_fallthru
    _
  // Predicated region
  $region6: #{seqmodel_forward.5} parent=0 // pred_check
    _
  $region7: #{seqmodel_forward.5} parent=0 // pred_check_branch
    %16 = sbr.rel (0) target = $region9
  $region8: #{seqmodel_forward.5} parent=0 // pred_region
    _
  $region9: #{seqmodel_forward.5} parent=0 // pred_fallthru
    _
  // Predicated region
  $region10: #{seqmodel_forward.5} parent=0 // pred_check
    _
  $region11: #{seqmodel_forward.5} parent=0 // pred_check_branch
    %18 = sbr.rel (0) target = $region13
  $region12: #{seqmodel_forward.5} parent=0 // pred_region
    _
  $region13: #{seqmodel_forward.5} parent=0 // pred_fallthru
    _
  // Predicated region
  $region14: #{seqmodel_forward.5} parent=0 // pred_check
    _
  $region15: #{seqmodel_forward.5} parent=0 // pred_check_branch
    %20 = sbr.rel (0) target = $region17
  $region16: #{seqmodel_forward.5} parent=0 // pred_region
    _
  $region17: #{seqmodel_forward.5} parent=0 // pred_fallthru
    _
  // Predicated region
  $region18: #{seqmodel_forward.5} parent=0 // pred_check
    _
  $region19: #{seqmodel_forward.5} parent=0 // pred_check_branch
    %22 = sbr.rel (0) target = $region21
  $region20: #{seqmodel_forward.5} parent=0 // pred_region
    _
  $region21: #{seqmodel_forward.5} parent=0 // pred_fallthru
    _
  // Predicated region
  $region22: #{seqmodel_forward.5} parent=0 // pred_check
    _
  $region23: #{seqmodel_forward.5} parent=0 // pred_check_branch
    %24 = sbr.rel (0) target = $region25
  $region24: #{seqmodel_forward.5} parent=0 // pred_region
    _
  $region25: #{seqmodel_forward.5} parent=0 // pred_fallthru
    _
  %v26 = vld [vmem:[%s0] sm:$0xf]
  %v27 = vld [vmem:[%s0 + $0x4] sm:$0xf]
  %v28 = vld [vmem:[%s0 + $0x8] sm:$0xf]
  %v29 = vld [vmem:[%s0 + $0xc] sm:$0xf]
  %v30 = vld [vmem:[%s1] sm:$0xf]
  %v31 = vld [vmem:[%s1 + $0x4] sm:$0xf]
  %v32 = vld [vmem:[%s2] sm:$0x1]
  %v34 = vlaneseq
  %v35 = vshrl.u32 %v34, 7
  %v36 = vsub.s32 0, %v35
  %v37 = vrot.slane %v32, %v36
  %v43 = vunpack.c.l.b16 %v26
  %v44 = vunpack.c.l.b16 %v27
  %v45 = vunpack.c.l.b16 %v28
  %v46 = vunpack.c.l.b16 %v29
  %v47 = vpack.c.b16 %v44, %v43
  %v48 = vpack.c.b16 %v46, %v45
  %v51 = vunpack.c.l.b16 %v30
  %v52 = vunpack.c.l.b16 %v31
  %v53 = vpack.c.b16 %v52, %v51
  %vm55 = vcmask 130048
  %v57 = vsel %vm55, %v47, 0
  %v60 = vsel %vm55, %v48, 0
  %62 = vmatprep.subr.bf16.mxu0 0
  %63 = vmatpush1.bf16.msra.mxu0 %v53
  %64 = vmatprep.subr.bf16.mxu0 0
  %65 = vmatpush1.bf16.msra.mxu0 0
  %66 = vmatprep.subr.bf16.mxu0 0
  %67 = vmatpush1.bf16.msra.mxu0 0
  %68 = vmatprep.subr.bf16.mxu0 0
  %69 = vmatpush1.bf16.msra.mxu0 0
  %70 = vmatprep.subr.bf16.mxu0 0
  %71 = vmatpush1.bf16.msra.mxu0 0
  %72 = vmatprep.subr.bf16.mxu0 0
  %73 = vmatpush1.bf16.msra.mxu0 0
  %74 = vmatprep.subr.bf16.mxu0 0
  %75 = vmatpush1.bf16.msra.mxu0 0
  %76 = vmatprep.subr.bf16.mxu0 0
  %77 = vmatpush1.bf16.msra.mxu0 0
  %78 = vmatprep.subr.bf16.mxu0 0
  %79 = vmatpush1.bf16.msra.mxu0 0
  %80 = vmatprep.subr.bf16.mxu0 0
  %81 = vmatpush1.bf16.msra.mxu0 0
  %82 = vmatprep.subr.bf16.mxu0 0
  %83 = vmatpush1.bf16.msra.mxu0 0
  %84 = vmatprep.subr.bf16.mxu0 0
  %85 = vmatpush1.bf16.msra.mxu0 0
  %86 = vmatprep.subr.bf16.mxu0 0
  %87 = vmatpush1.bf16.msra.mxu0 0
  %88 = vmatprep.subr.bf16.mxu0 0
  %89 = vmatpush1.bf16.msra.mxu0 0
  %90 = vmatprep.subr.bf16.mxu0 0
  %91 = vmatpush1.bf16.msra.mxu0 0
  %92 = vmatprep.subr.bf16.mxu0 0
  %93 = vmatpush1.bf16.msra.mxu0 0
  %94 = vmatprep.mubr.bf16.mxu0 0
  %95 = vmatmul.mubr.bf16.gmra.mrb[0].mxu0 %v57
  %v96 = vpop.f32.mrb[0].mxu0
  %v97 = vadd.f32 %v37, %v96
  %v98 = vpop.f32.mrb[0].mxu0
  %v99 = vpop.f32.mrb[0].mxu0
  %v100 = vadd.f32 %v37, %v99
  %v101 = vpop.f32.mrb[0].mxu0
  %102 = vmatprep.mubr.bf16.mxu0 0
  %103 = vmatmul.mubr.bf16.gmra.mrb[0].mxu0 %v60
  %v104 = vpop.f32.mrb[0].mxu0
  %v105 = vadd.f32 %v37, %v104
  %v106 = vpop.f32.mrb[0].mxu0
  %v107 = vpop.f32.mrb[0].mxu0
  %v108 = vadd.f32 %v37, %v107
  %v109 = vpop.f32.mrb[0].mxu0
  %110 = vdwg.mxu0
  %vm111 = vcmask 171008
  %112 = vst.msk [vmem:[%s7] sm:$0xff] %vm111, %v97
  %113 = vst.msk [vmem:[%s7 + $0x8] sm:$0xff] %vm111, %v100
  %114 = vst.msk [vmem:[%s7 + $0x10] sm:$0xff] %vm111, %v105
  %115 = vst.msk [vmem:[%s7 + $0x18] sm:$0xff] %vm111, %v108
  %v116 = vxor.u32 %v97, 2147483648
  %v117 = vxor.u32 %v100, 2147483648
  %v118 = vxor.u32 %v105, 2147483648
  %v119 = vxor.u32 %v108, 2147483648
  %v120 = vmul.f32 %v116, 1.442695
  %v121 = vpow.pop %v120
  %v122 = vmul.f32 %v117, 1.442695
  %v123 = vpow.pop %v122
  %v124 = vmul.f32 %v118, 1.442695
  %v125 = vpow.pop %v124
  %v126 = vmul.f32 %v119, 1.442695
  %v127 = vpow.pop %v126
  %v128 = vadd.f32 %v121, 1.0
  %v129 = vadd.f32 %v123, 1.0
  %v130 = vadd.f32 %v125, 1.0
  %v131 = vadd.f32 %v127, 1.0
  %v132 = vrcp.pop %v128
  %v133 = vmul.f32 1.0, %v132
  %v134 = vrcp.pop %v129
  %v135 = vmul.f32 1.0, %v134
  %v136 = vrcp.pop %v130
  %v137 = vmul.f32 1.0, %v136
  %v138 = vrcp.pop %v131
  %v139 = vmul.f32 1.0, %v138
  %v140 = vmul.f32 %v133, 2.0
  %v141 = vmul.f32 %v135, 2.0
  %v142 = vmul.f32 %v137, 2.0
  %v143 = vmul.f32 %v139, 2.0
  %v144 = vld [vmem:[%s4] sm:$0x1]
  %v145 = vld [vmem:[%s5] sm:$0xff]
  %v146 = vld [vmem:[%s5 + $0x8] sm:$0xff]
  %v147 = vld [vmem:[%s5 + $0x10] sm:$0xff]
  %v148 = vld [vmem:[%s5 + $0x18] sm:$0xff]
  %vm149 = vcmp.eq.s32.totalorder %v144, 0
  %v150 = vsel %vm149, 1, 0
  %v151 = vlaneseq
  %v152 = vshrl.u32 %v151, 7
  %v153 = vsub.s32 0, %v152
  %v154 = vrot.slane %v150, %v153
  %vm155 = vcmp.eq.s32.totalorder %v154, 1
  %157 = vset.pattern.permute.xlu0 0
  %158 = vperm.xlu0 %157, %v145
  %v159 = vpop.permute.xlu0 %158
  %162 = vset.pattern.permute.xlu0 0
  %163 = vperm.xlu0 %162, %v146
  %v164 = vpop.permute.xlu0 %163
  %167 = vset.pattern.permute.xlu0 0
  %168 = vperm.xlu0 %167, %v147
  %v169 = vpop.permute.xlu0 %168
  %172 = vset.pattern.permute.xlu0 0
  %173 = vperm.xlu0 %172, %v148
  %v174 = vpop.permute.xlu0 %173
  %176 = vset.pattern.permute.xlu0 1
  %177 = vperm.xlu0 %176, %v145
  %v178 = vpop.permute.xlu0 %177
  %180 = vset.pattern.permute.xlu0 1
  %181 = vperm.xlu0 %180, %v146
  %v182 = vpop.permute.xlu0 %181
  %184 = vset.pattern.permute.xlu0 1
  %185 = vperm.xlu0 %184, %v147
  %v186 = vpop.permute.xlu0 %185
  %188 = vset.pattern.permute.xlu0 1
  %189 = vperm.xlu0 %188, %v148
  %v190 = vpop.permute.xlu0 %189
  %v192 = vsel %vm155, %v159, %v178
  %v193 = vsel %vm155, %v164, %v182
  %v194 = vsel %vm155, %v169, %v186
  %v195 = vsel %vm155, %v174, %v190
  %v196 = vsub.f32 %v140, 0.5
  %v197 = vsub.f32 %v141, 0.5
  %v198 = vsub.f32 %v142, 0.5
  %v199 = vsub.f32 %v143, 0.5
  %v200 = vadd.f32 %v196, %v192
  %v201 = vadd.f32 %v197, %v193
  %v202 = vadd.f32 %v198, %v194
  %v203 = vadd.f32 %v199, %v195
  %v204 = vmul.f32 %v200, 4.0
  %v205 = vmul.f32 %v201, 4.0
  %v206 = vmul.f32 %v202, 4.0
  %v207 = vmul.f32 %v203, 4.0
  %v208 = vmul.f32 %v140, %v140
  %v209 = vmul.f32 %v141, %v141
  %v210 = vmul.f32 %v142, %v142
  %v211 = vmul.f32 %v143, %v143
  %v212 = vld [vmem:[%s3] sm:$0x1]
  %v214 = vlaneseq
  %v215 = vshrl.u32 %v214, 7
  %v216 = vsub.s32 0, %v215
  %v217 = vrot.slane %v212, %v216
  %v219 = vmul.f32 %v208, %v217
  %v220 = vmul.f32 %v209, %v217
  %v221 = vmul.f32 %v210, %v217
  %v222 = vmul.f32 %v211, %v217
  %vm223 = vcmp.lt.s32.totalorder %v144, 2
  %vm224 = vcmp.lt.s32.totalorder %v144, 4
  %v225 = vsel %vm224, 1, 0
  %v226 = vlaneseq
  %v227 = vshrl.u32 %v226, 7
  %v228 = vsub.s32 0, %v227
  %v229 = vrot.slane %v225, %v228
  %vm230 = vcmp.eq.s32.totalorder %v229, 1
  %v231 = vsel %vm230, %v219, %v133
  %v232 = vsel %vm230, %v220, %v135
  %v233 = vsel %vm230, %v221, %v137
  %v234 = vsel %vm230, %v222, %v139
  %v235 = vsel %vm223, 1, 0
  %v236 = vlaneseq
  %v237 = vshrl.u32 %v236, 7
  %v238 = vsub.s32 0, %v237
  %v239 = vrot.slane %v235, %v238
  %vm240 = vcmp.eq.s32.totalorder %v239, 1
  %v241 = vsel %vm240, %v204, %v231
  %v242 = vsel %vm240, %v205, %v232
  %v243 = vsel %vm240, %v206, %v233
  %v244 = vsel %vm240, %v207, %v234
  %245 = vst.msk [vmem:[%s6] sm:$0xff] %vm111, %v241
  %246 = vst.msk [vmem:[%s6 + $0x8] sm:$0xff] %vm111, %v242
  %247 = vst.msk [vmem:[%s6 + $0x10] sm:$0xff] %vm111, %v243
  %248 = vst.msk [vmem:[%s6 + $0x18] sm:$0xff] %vm111, %v244
  // Predicated region
  $region26: #{seqmodel_forward.5} parent=0 // pred_check
    _
  $region27: #{seqmodel_forward.5} parent=0 // pred_check_branch
    %250 = sbr.rel (0) target = $region29
  $region28: #{seqmodel_forward.5} parent=0 // pred_region
    _
  $region29: #{seqmodel_forward.5} parent=0 // pred_fallthru
    _
  // Predicated region
  $region30: #{seqmodel_forward.5} parent=0 // pred_check
    _
  $region31: #{seqmodel_forward.5} parent=0 // pred_check_branch
    %252 = sbr.rel (0) target = $region33
  $region32: #{seqmodel_forward.5} parent=0 // pred_region
    _
  $region33: #{seqmodel_forward.5} parent=0 // pred_fallthru
    _
  // Predicated region
  $region34: #{seqmodel_forward.5} parent=0 // pred_check
    _
  $region35: #{seqmodel_forward.5} parent=0 // pred_check_branch
    %254 = sbr.rel (0) target = $region37
  $region36: #{seqmodel_forward.5} parent=0 // pred_region
    _
  $region37: #{seqmodel_forward.5} parent=0 // pred_fallthru
    _
  // Predicated region
  $region38: #{seqmodel_forward.5} parent=0 // pred_check
    _
  $region39: #{seqmodel_forward.5} parent=0 // pred_check_branch
    %256 = sbr.rel (0) target = $region41
  $region40: #{seqmodel_forward.5} parent=0 // pred_region
    _
  $region41: #{seqmodel_forward.5} parent=0 // pred_fallthru
    _

</llo_original>
